<compile_context>
chip_gen: v7x
topology: tpu7x:2x2x1
jax: 0.10.0
libtpu: 0.0.40
codegen_flags: <defaults>
</compile_context>

<pallas_src>
import functools

import jax
import jax.numpy as jnp
from jax import lax
from jax.experimental import pallas as pl
from jax.experimental.pallas import tpu as pltpu


def _split_to_bf16_terms(rows):
    """Exactly decompose `rows` into <= 3 bf16 terms whose f32 sum == rows.

    bf16 inputs need a single term.  For f32 (or f16 upcast to f32) the classic
    hi/mid/lo bf16 split is exact: 3 x 8 significand bits cover f32's 24, every
    residual is exactly representable, so hi + mid + lo == x bit-exactly for
    finite, non-denormal values (any faithful-rounding cast works).
    """
    if rows.dtype == jnp.bfloat16:
        return [rows]
    r = rows.astype(jnp.float32)
    hi = r.astype(jnp.bfloat16)
    r_mid = r - hi.astype(jnp.float32)
    mid = r_mid.astype(jnp.bfloat16)
    r_lo = r_mid - mid.astype(jnp.float32)
    lo = r_lo.astype(jnp.bfloat16)
    return [hi, mid, lo]


def _tokenize_kernel(x_ref, o_ref, *, k, Ph, Pw, W, cblk):
    """One grid step: CBLK channel planes -> their k*k unfold slabs.

    x_ref: (CBLK, Ph, k*W)      x_ref[c, ph, kh*W + w] = x[c, ph*k + kh, w]
    o_ref: (CBLK, k*k, Ph, Pw)  o_ref[c, kh*k+kw, ph, pw] = x[c, ph*k+kh, pw*k+kw]
    """
    # One-hot lane-deinterleave matrices, hoisted out of all loops:
    #   sel[kw][w, pw] == 1.0  iff  w == pw*k + kw
    w_idx = lax.broadcasted_iota(jnp.int32, (W, Pw), 0)
    pw_idx = lax.broadcasted_iota(jnp.int32, (W, Pw), 1)
    sel = [(w_idx == pw_idx * k + kw).astype(jnp.bfloat16) for kw in range(k)]

    def channel_body(c, carry):
        for kh in range(k):
            # Contiguous (possibly lane-unaligned) static slice: the k image
            # rows of a patch row sit side by side in the lane dim, so the kh
            # selection is a pure copy.
            rows = x_ref[c, :, pl.ds(kh * W, W)]                # (Ph, W)
            terms = _split_to_bf16_terms(rows)
            for kw in range(k):
                acc = None
                for t in terms:                                 # fixed sum order
                    r = jnp.dot(t, sel[kw], preferred_element_type=jnp.float32)
                    acc = r if acc is None else acc + r
                o_ref[c, kh * k + kw] = acc.astype(o_ref.dtype)  # (Ph, Pw) slab
        return carry

    # fori_loop (not Python unrolling) bounds live ranges across channels.
    lax.fori_loop(0, cblk, channel_body, 0)


def tokenize(x, in_planes, num_patches=32, *, max_channels_per_step=8):
    """Pallas equivalent of Tokenize(in_planes, num_patches)(x).

    x: (N, C, H, W) -> (N, C*k*k, (H//k)*(W//k)),  k = in_planes // num_patches.
    """
    N, C, H, W = x.shape
    k = in_planes // num_patches
    assert k >= 1 and H % k == 0 and W % k == 0, "spatial dims must divide the patch size"
    assert jnp.issubdtype(x.dtype, jnp.floating), "float dtypes only"
    # TODO(synk): integer dtypes need a strided-copy path (v7x MXU has no int matmul).

    if k == 1:  # 1x1 unfold with stride 1 is a pure (free) reshape.
        return x.reshape(N, C, H * W)

    Ph, Pw, kk = H // k, W // k, k * k
    NC, L = N * C, (H // k) * (W // k)

    # Channels per grid step: big enough to amortize the ~0.35 us/step overhead,
    # small enough that double-buffered in+out blocks stay well inside every
    # generation's default scoped VMEM.
    plane_bytes = H * W * x.dtype.itemsize
    target = max(1, min(max_channels_per_step, (2 * 1024 * 1024) // max(plane_bytes, 1)))
    cblk = max(d for d in range(1, min(target, NC) + 1) if NC % d == 0)

    # Free row-major relabel: fuse (N, C) and group each patch row's k image
    # rows into the lane dim -> dense VMEM blocks, fully contiguous HBM DMAs.
    x3 = x.reshape(NC, Ph, k * W)

    n_terms = 1 if x.dtype == jnp.bfloat16 else 3
    cost = pl.CostEstimate(
        flops=2 * n_terms * NC * H * W * W,   # one-hot deinterleave matmuls
        transcendentals=0,
        bytes_accessed=2 * NC * H * W * x.dtype.itemsize,
    )

    out4 = pl.pallas_call(
        functools.partial(_tokenize_kernel, k=k, Ph=Ph, Pw=Pw, W=W, cblk=cblk),
        out_shape=jax.ShapeDtypeStruct((NC, kk, Ph, Pw), x.dtype),
        grid=(NC // cblk,),
        in_specs=[pl.BlockSpec((cblk, Ph, k * W), lambda b: (b, 0, 0))],
        out_specs=pl.BlockSpec((cblk, kk, Ph, Pw), lambda b: (b, 0, 0, 0)),
        compiler_params=pltpu.CompilerParams(dimension_semantics=("parallel",)),
        cost_estimate=cost,
    )(x3)

    # Free row-major relabels: rows (c, kh, kw) -> c*k*k + kh*k + kw and columns
    # (ph, pw) -> ph*Pw + pw, exactly torch.nn.Unfold's ordering.
    return out4.reshape(N, C * kk, L)


def _unfold_reference(x, k):
    """Pure-JAX reference with torch.nn.Unfold semantics (kernel=stride=k)."""
    N, C, H, W = x.shape
    Ph, Pw = H // k, W // k
    x6 = x.reshape(N, C, Ph, k, Pw, k)          # (n, c, ph, kh, pw, kw)
    x6 = jnp.transpose(x6, (0, 1, 3, 5, 2, 4))  # (n, c, kh, kw, ph, pw)
    return x6.reshape(N, C * k * k, Ph * Pw)


if __name__ == "__main__":
    key = jax.random.PRNGKey(0)
    key_a, key_b = jax.random.split(key)

    # Case 1: f32, k = in_planes // num_patches = 2, x: (2, 4, 16, 16).
    N, C, H, W = 2, 4, 16, 16
    in_planes, num_patches = 4, 2
    k = in_planes // num_patches
    x = jax.random.normal(key_a, (N, C, H, W), dtype=jnp.float32)
    out = jax.block_until_ready(tokenize(x, in_planes, num_patches))
    ref = _unfold_reference(x, k)
    assert out.shape == (N, C * k * k, (H // k) * (W // k)), out.shape
    assert out.dtype == x.dtype
    # The 3-term bf16 split is designed to be bit-exact for finite f32; assert
    # to f32-ulp tolerance.
    assert bool(jnp.allclose(out, ref, rtol=1e-6, atol=0.0)), "f32 unfold mismatch"

    # Case 2: bf16, k = 4, multiple grid steps (exact copy expected).
    N2, C2, H2, W2 = 4, 4, 16, 16
    in_planes2, num_patches2 = 8, 2
    ksz2 = in_planes2 // num_patches2
    x2 = jax.random.normal(key_b, (N2, C2, H2, W2), dtype=jnp.bfloat16)
    out2 = jax.block_until_ready(tokenize(x2, in_planes2, num_patches2))
    ref2 = _unfold_reference(x2, ksz2)
    assert out2.shape == (N2, C2 * ksz2 * ksz2, (H2 // ksz2) * (W2 // ksz2)), out2.shape
    assert out2.dtype == x2.dtype
    assert bool(jnp.array_equal(out2, ref2)), "bf16 unfold mismatch"

    print("KERNEL_OK")
</pallas_src>

<mosaic_0001>
module attributes {stable_mosaic.version = 11 : i64} {
  func.func @_tokenize_kernel(%arg0: i32, %arg1: memref<8x8x32xf32, #tpu.memory_space<vmem>>, %arg2: memref<8x4x8x8xf32, #tpu.memory_space<vmem>>) attributes {dimension_semantics = [#tpu.dimension_semantics<parallel>], iteration_bounds = array<i64: 1>, scalar_prefetch = 0 : i64, scratch_operands = 0 : i64, tpu.core_type = #tpu.core_type<tc>, window_params = [{transform_indices = @transform_0, window_bounds = array<i64: 8, 8, 32>}, {transform_indices = @transform_1, window_bounds = array<i64: 8, 4, 8, 8>}]} {
    %0 = tpu.iota {dimensions = array<i32: 0>} : vector<16x8xi32>
    %1 = tpu.iota {dimensions = array<i32: 1>} : vector<16x8xi32>
    %c2_i32 = arith.constant 2 : i32
    %2 = vector.broadcast %c2_i32 : i32 to vector<16x8xi32>
    %3 = arith.muli %1, %2 : vector<16x8xi32>
    %c0_i32 = arith.constant 0 : i32
    %4 = vector.broadcast %c0_i32 : i32 to vector<16x8xi32>
    %5 = arith.addi %3, %4 : vector<16x8xi32>
    %6 = arith.cmpi eq, %0, %5 : vector<16x8xi32>
    %7 = arith.extui %6 : vector<16x8xi1> to vector<16x8xi32>
    %8 = arith.sitofp %7 : vector<16x8xi32> to vector<16x8xf32>
    %9 = arith.truncf %8 : vector<16x8xf32> to vector<16x8xbf16>
    %c2_i32_0 = arith.constant 2 : i32
    %10 = vector.broadcast %c2_i32_0 : i32 to vector<16x8xi32>
    %11 = arith.muli %1, %10 : vector<16x8xi32>
    %c1_i32 = arith.constant 1 : i32
    %12 = vector.broadcast %c1_i32 : i32 to vector<16x8xi32>
    %13 = arith.addi %11, %12 : vector<16x8xi32>
    %14 = arith.cmpi eq, %0, %13 : vector<16x8xi32>
    %15 = arith.extui %14 : vector<16x8xi1> to vector<16x8xi32>
    %16 = arith.sitofp %15 : vector<16x8xi32> to vector<16x8xf32>
    %17 = arith.truncf %16 : vector<16x8xf32> to vector<16x8xbf16>
    %c0_i32_1 = arith.constant 0 : i32
    %c8_i32 = arith.constant 8 : i32
    %18 = arith.addi %c0_i32_1, %c8_i32 : i32
    %c1_i32_2 = arith.constant 1 : i32
    scf.for %arg3 = %c0_i32_1 to %18 step %c1_i32_2  : i32 {
      %19 = arith.index_cast %arg3 : i32 to index
      %c0 = arith.constant 0 : index
      %c0_4 = arith.constant 0 : index
      %20 = vector.load %arg1[%19, %c0, %c0_4] : memref<8x8x32xf32, #tpu.memory_space<vmem>>, vector<1x8x16xf32>
      %21 = vector.shape_cast %20 : vector<1x8x16xf32> to vector<8x16xf32>
      %22 = arith.truncf %21 : vector<8x16xf32> to vector<8x16xbf16>
      %23 = arith.extf %22 : vector<8x16xbf16> to vector<8x16xf32>
      %24 = arith.subf %21, %23 : vector<8x16xf32>
      %25 = arith.truncf %24 : vector<8x16xf32> to vector<8x16xbf16>
      %26 = arith.extf %25 : vector<8x16xbf16> to vector<8x16xf32>
      %27 = arith.subf %24, %26 : vector<8x16xf32>
      %28 = arith.truncf %27 : vector<8x16xf32> to vector<8x16xbf16>
      %cst = arith.constant dense<0.000000e+00> : vector<8x8xf32>
      %29 = tpu.matmul %22, %9, %cst {dimension_numbers = #tpu.dot_dimension_numbers<[1], [0], [0], [1], [0, 0, 1, 1], [], []>} : vector<8x16xbf16>, vector<16x8xbf16>, vector<8x8xf32> -> vector<8x8xf32>
      %cst_5 = arith.constant dense<0.000000e+00> : vector<8x8xf32>
      %30 = tpu.matmul %25, %9, %cst_5 {dimension_numbers = #tpu.dot_dimension_numbers<[1], [0], [0], [1], [0, 0, 1, 1], [], []>} : vector<8x16xbf16>, vector<16x8xbf16>, vector<8x8xf32> -> vector<8x8xf32>
      %31 = arith.addf %29, %30 : vector<8x8xf32>
      %cst_6 = arith.constant dense<0.000000e+00> : vector<8x8xf32>
      %32 = tpu.matmul %28, %9, %cst_6 {dimension_numbers = #tpu.dot_dimension_numbers<[1], [0], [0], [1], [0, 0, 1, 1], [], []>} : vector<8x16xbf16>, vector<16x8xbf16>, vector<8x8xf32> -> vector<8x8xf32>
      %33 = arith.addf %31, %32 : vector<8x8xf32>
      %34 = arith.index_cast %arg3 : i32 to index
      %c0_7 = arith.constant 0 : index
      %c0_8 = arith.constant 0 : index
      %c0_9 = arith.constant 0 : index
      %35 = vector.load %arg2[%34, %c0_7, %c0_8, %c0_9] : memref<8x4x8x8xf32, #tpu.memory_space<vmem>>, vector<1x1x8x8xf32>
      %36 = vector.shape_cast %35 : vector<1x1x8x8xf32> to vector<8x8xf32>
      %37 = vector.shape_cast %33 : vector<8x8xf32> to vector<1x1x8x8xf32>
      tpu.vector_store %arg2[%34, %c0_7, %c0_8, %c0_9], %37 {strides = array<i32>} : memref<8x4x8x8xf32, #tpu.memory_space<vmem>>, vector<1x1x8x8xf32>,
      %cst_10 = arith.constant dense<0.000000e+00> : vector<8x8xf32>
      %38 = tpu.matmul %22, %17, %cst_10 {dimension_numbers = #tpu.dot_dimension_numbers<[1], [0], [0], [1], [0, 0, 1, 1], [], []>} : vector<8x16xbf16>, vector<16x8xbf16>, vector<8x8xf32> -> vector<8x8xf32>
      %cst_11 = arith.constant dense<0.000000e+00> : vector<8x8xf32>
      %39 = tpu.matmul %25, %17, %cst_11 {dimension_numbers = #tpu.dot_dimension_numbers<[1], [0], [0], [1], [0, 0, 1, 1], [], []>} : vector<8x16xbf16>, vector<16x8xbf16>, vector<8x8xf32> -> vector<8x8xf32>
      %40 = arith.addf %38, %39 : vector<8x8xf32>
      %cst_12 = arith.constant dense<0.000000e+00> : vector<8x8xf32>
      %41 = tpu.matmul %28, %17, %cst_12 {dimension_numbers = #tpu.dot_dimension_numbers<[1], [0], [0], [1], [0, 0, 1, 1], [], []>} : vector<8x16xbf16>, vector<16x8xbf16>, vector<8x8xf32> -> vector<8x8xf32>
      %42 = arith.addf %40, %41 : vector<8x8xf32>
      %43 = arith.index_cast %arg3 : i32 to index
      %c1 = arith.constant 1 : index
      %c0_13 = arith.constant 0 : index
      %c0_14 = arith.constant 0 : index
      %44 = vector.load %arg2[%43, %c1, %c0_13, %c0_14] : memref<8x4x8x8xf32, #tpu.memory_space<vmem>>, vector<1x1x8x8xf32>
      %45 = vector.shape_cast %44 : vector<1x1x8x8xf32> to vector<8x8xf32>
      %46 = vector.shape_cast %42 : vector<8x8xf32> to vector<1x1x8x8xf32>
      tpu.vector_store %arg2[%43, %c1, %c0_13, %c0_14], %46 {strides = array<i32>} : memref<8x4x8x8xf32, #tpu.memory_space<vmem>>, vector<1x1x8x8xf32>,
      %47 = arith.index_cast %arg3 : i32 to index
      %c0_15 = arith.constant 0 : index
      %c16 = arith.constant 16 : index
      %48 = vector.load %arg1[%47, %c0_15, %c16] : memref<8x8x32xf32, #tpu.memory_space<vmem>>, vector<1x8x16xf32>
      %49 = vector.shape_cast %48 : vector<1x8x16xf32> to vector<8x16xf32>
      %50 = arith.truncf %49 : vector<8x16xf32> to vector<8x16xbf16>
      %51 = arith.extf %50 : vector<8x16xbf16> to vector<8x16xf32>
      %52 = arith.subf %49, %51 : vector<8x16xf32>
      %53 = arith.truncf %52 : vector<8x16xf32> to vector<8x16xbf16>
      %54 = arith.extf %53 : vector<8x16xbf16> to vector<8x16xf32>
      %55 = arith.subf %52, %54 : vector<8x16xf32>
      %56 = arith.truncf %55 : vector<8x16xf32> to vector<8x16xbf16>
      %cst_16 = arith.constant dense<0.000000e+00> : vector<8x8xf32>
      %57 = tpu.matmul %50, %9, %cst_16 {dimension_numbers = #tpu.dot_dimension_numbers<[1], [0], [0], [1], [0, 0, 1, 1], [], []>} : vector<8x16xbf16>, vector<16x8xbf16>, vector<8x8xf32> -> vector<8x8xf32>
      %cst_17 = arith.constant dense<0.000000e+00> : vector<8x8xf32>
      %58 = tpu.matmul %53, %9, %cst_17 {dimension_numbers = #tpu.dot_dimension_numbers<[1], [0], [0], [1], [0, 0, 1, 1], [], []>} : vector<8x16xbf16>, vector<16x8xbf16>, vector<8x8xf32> -> vector<8x8xf32>
      %59 = arith.addf %57, %58 : vector<8x8xf32>
      %cst_18 = arith.constant dense<0.000000e+00> : vector<8x8xf32>
      %60 = tpu.matmul %56, %9, %cst_18 {dimension_numbers = #tpu.dot_dimension_numbers<[1], [0], [0], [1], [0, 0, 1, 1], [], []>} : vector<8x16xbf16>, vector<16x8xbf16>, vector<8x8xf32> -> vector<8x8xf32>
      %61 = arith.addf %59, %60 : vector<8x8xf32>
      %62 = arith.index_cast %arg3 : i32 to index
      %c2 = arith.constant 2 : index
      %c0_19 = arith.constant 0 : index
      %c0_20 = arith.constant 0 : index
      %63 = vector.load %arg2[%62, %c2, %c0_19, %c0_20] : memref<8x4x8x8xf32, #tpu.memory_space<vmem>>, vector<1x1x8x8xf32>
      %64 = vector.shape_cast %63 : vector<1x1x8x8xf32> to vector<8x8xf32>
      %65 = vector.shape_cast %61 : vector<8x8xf32> to vector<1x1x8x8xf32>
      tpu.vector_store %arg2[%62, %c2, %c0_19, %c0_20], %65 {strides = array<i32>} : memref<8x4x8x8xf32, #tpu.memory_space<vmem>>, vector<1x1x8x8xf32>,
      %cst_21 = arith.constant dense<0.000000e+00> : vector<8x8xf32>
      %66 = tpu.matmul %50, %17, %cst_21 {dimension_numbers = #tpu.dot_dimension_numbers<[1], [0], [0], [1], [0, 0, 1, 1], [], []>} : vector<8x16xbf16>, vector<16x8xbf16>, vector<8x8xf32> -> vector<8x8xf32>
      %cst_22 = arith.constant dense<0.000000e+00> : vector<8x8xf32>
      %67 = tpu.matmul %53, %17, %cst_22 {dimension_numbers = #tpu.dot_dimension_numbers<[1], [0], [0], [1], [0, 0, 1, 1], [], []>} : vector<8x16xbf16>, vector<16x8xbf16>, vector<8x8xf32> -> vector<8x8xf32>
      %68 = arith.addf %66, %67 : vector<8x8xf32>
      %cst_23 = arith.constant dense<0.000000e+00> : vector<8x8xf32>
      %69 = tpu.matmul %56, %17, %cst_23 {dimension_numbers = #tpu.dot_dimension_numbers<[1], [0], [0], [1], [0, 0, 1, 1], [], []>} : vector<8x16xbf16>, vector<16x8xbf16>, vector<8x8xf32> -> vector<8x8xf32>
      %70 = arith.addf %68, %69 : vector<8x8xf32>
      %71 = arith.index_cast %arg3 : i32 to index
      %c3 = arith.constant 3 : index
      %c0_24 = arith.constant 0 : index
      %c0_25 = arith.constant 0 : index
      %72 = vector.load %arg2[%71, %c3, %c0_24, %c0_25] : memref<8x4x8x8xf32, #tpu.memory_space<vmem>>, vector<1x1x8x8xf32>
      %73 = vector.shape_cast %72 : vector<1x1x8x8xf32> to vector<8x8xf32>
      %74 = vector.shape_cast %70 : vector<8x8xf32> to vector<1x1x8x8xf32>
      tpu.vector_store %arg2[%71, %c3, %c0_24, %c0_25], %74 {strides = array<i32>} : memref<8x4x8x8xf32, #tpu.memory_space<vmem>>, vector<1x1x8x8xf32>,
    }
    %c8_i32_3 = arith.constant 8 : i32
    return
  }
  func.func @transform_0(%arg0: i32) -> (i32, i32, i32) {
    %c0_i32 = arith.constant 0 : i32
    %c0_i32_0 = arith.constant 0 : i32
    %c0_i32_1 = arith.constant 0 : i32
    return %arg0, %c0_i32, %c0_i32_0 : i32, i32, i32
  }
  func.func @transform_1(%arg0: i32) -> (i32, i32, i32, i32) {
    %c0_i32 = arith.constant 0 : i32
    %c0_i32_0 = arith.constant 0 : i32
    %c0_i32_1 = arith.constant 0 : i32
    %c0_i32_2 = arith.constant 0 : i32
    return %arg0, %c0_i32, %c0_i32_0, %c0_i32_1 : i32, i32, i32, i32
  }
}

</mosaic_0001>

<llo_original>
// kernel: tpu_custom_call.1
$region0: #{tpu_custom_call.1}
  #allocation0 [shape = 'u32[]', space=smem, size = 0x4, offset = 0x4, fixed_abs, tag = 'smem constant byte address 0x4 - core index']
  #allocation1 [shape = 'u32[144,128]{1,0:T(1,128)}', space=vmem, size = 0x12000, scoped, tag = 'internal scratch']
  %s0 = inlined_call_operand.hbm [shape: f32[8,8,32], index: 0, kind: input, shape index: {}]
  %s1 = inlined_call_operand.hbm [shape: f32[8,4,8,8], index: 1, kind: output, shape index: {}]
  %s2 = sld [smem:[#allocation0]]
  $region25: #{tpu_custom_call.1} parent=0
    _
  %s4 = ssub.s32 1, %s2
  %s5 = scalar_select 0, %s4, %s2
  $region1: #{tpu_custom_call.1} parent=0
    #allocation2 [shape = 'u8[32768]{0}', space=vmem, size = 0x8000, scoped, tag = 'input window, operand 0, single buffered']
    #allocation3 [shape = 's32[1]{0}', space=sflag, size = 0x4, scoped, tag = 'scoped memory for tpu_custom_call.1']
    #allocation4 [shape = 's32[1]{0}', space=sflag, size = 0x4, scoped, tag = 'scoped memory for tpu_custom_call.1']
    #allocation5 [shape = 'u8[131072]{0}', space=vmem, size = 0x20000, scoped, tag = 'output window, operand 0, single buffered']
    %6 = vsyncpa [#allocation3], 0
    %7 = vsyncpa [#allocation4], 0
    // Predicated region
    $region2: #{tpu_custom_call.1} parent=1 // pred_check
      _
    $region3: #{tpu_custom_call.1} parent=1 // pred_check_branch
      %9 = sbr.rel (0) target = $region5
    $region4: #{tpu_custom_call.1} parent=1 // pred_region
      %s11 = ssub.s32 1024, 1024
      %12 = vsyncadd [#allocation3], %s11
      %s13 = sshll.u32 [#allocation2], 4
      %s14 = int_to_ptr.vmem [resolvable:$true] %s13
      %19 = dma.hbm_to_vmem [thread:$0]  %s0, 1024, %s14, [#allocation3], 128, 128, 8
    $region5: #{tpu_custom_call.1} parent=1 // pred_fallthru
      _
    // Predicated region
    $region6: #{tpu_custom_call.1} parent=1 // pred_check
      _
    $region7: #{tpu_custom_call.1} parent=1 // pred_check_branch
      %21 = sbr.rel (0) target = $region9
    $region8: #{tpu_custom_call.1} parent=1 // pred_region
      %22 = dma.done [#allocation3], 1024
    $region9: #{tpu_custom_call.1} parent=1 // pred_fallthru
      _
    %v24 = vlaneseq
    %v25 = vshrl.u32 %v24, 7
    %v26 = vadd.s32 %v25, 8
    %v27 = vlaneseq
    %v28 = vand.u32 %v27, 127
    %v29 = vmul.u32 %v28, 2
    %vm30 = vcmp.eq.s32.totalorder %v25, %v29
    %vm31 = vcmp.eq.s32.totalorder %v26, %v29
    %v32 = vsel %vm30, 1, 0
    %v33 = vsel %vm31, 1, 0
    %v34 = vcvt.s32.f32 %v32
    %v35 = vcvt.s32.f32 %v33
    %v36 = vpack.c.bf16 %v35, %v34
    %v37 = vadd.s32 %v29, 1
    %vm38 = vcmp.eq.s32.totalorder %v25, %v37
    %vm39 = vcmp.eq.s32.totalorder %v26, %v37
    %v40 = vsel %vm38, 1, 0
    %v41 = vsel %vm39, 1, 0
    %v42 = vcvt.s32.f32 %v40
    %v43 = vcvt.s32.f32 %v41
    %v44 = vpack.c.bf16 %v43, %v42
    loop: start=0, step=1, limit=8
    $region10: #{tpu_custom_call.1} parent=1 // loop_pre_header
      _
    $region11: #{tpu_custom_call.1} parent=1 // loop_header
      %s46 = sphi 0, %s50
      %p47 = scmp.ge.s32.totalorder %s46, 8
    $region12: #{tpu_custom_call.1} parent=1 // loop_header_branch
      %49 = sbr.rel (%p47) target = $region16
    $region13: #{tpu_custom_call.1} parent=1 // loop_body
      %s51 = smul.u32 %s46, 8
      %s52 = scalar_lea.vmem [#allocation2], %s51
      %v53 = vld [vmem:[%s52] sm:$0xff]
      %v54 = vpack.c.bf16 %v53, %v53
      %v55 = vunpack.c.l.bf16 %v54
      %v56 = vsub.f32 %v53, %v55
      %v57 = vpack.c.bf16 %v56, %v56
      %v58 = vunpack.c.l.bf16 %v57
      %v59 = vsub.f32 %v56, %v58
      %v60 = vpack.c.bf16 %v59, %v59
      %vm61 = vcmask 130048
      %v63 = vsel %vm61, %v57, 0
      %65 = vmatprep.subr.bf16.mxu0 0
      %66 = vmatpush1.bf16.msra.mxu0 %v36
      %67 = vmatprep.subr.bf16.mxu0 0
      %68 = vmatpush1.bf16.msra.mxu0 0
      %69 = vmatprep.subr.bf16.mxu0 0
      %70 = vmatpush1.bf16.msra.mxu0 0
      %71 = vmatprep.subr.bf16.mxu0 0
      %72 = vmatpush1.bf16.msra.mxu0 0
      %73 = vmatprep.subr.bf16.mxu0 0
      %74 = vmatpush1.bf16.msra.mxu0 0
      %75 = vmatprep.subr.bf16.mxu0 0
      %76 = vmatpush1.bf16.msra.mxu0 0
      %77 = vmatprep.subr.bf16.mxu0 0
      %78 = vmatpush1.bf16.msra.mxu0 0
      %79 = vmatprep.subr.bf16.mxu0 0
      %80 = vmatpush1.bf16.msra.mxu0 0
      %81 = vmatprep.subr.bf16.mxu0 0
      %82 = vmatpush1.bf16.msra.mxu0 0
      %83 = vmatprep.subr.bf16.mxu0 0
      %84 = vmatpush1.bf16.msra.mxu0 0
      %85 = vmatprep.subr.bf16.mxu0 0
      %86 = vmatpush1.bf16.msra.mxu0 0
      %87 = vmatprep.subr.bf16.mxu0 0
      %88 = vmatpush1.bf16.msra.mxu0 0
      %89 = vmatprep.subr.bf16.mxu0 0
      %90 = vmatpush1.bf16.msra.mxu0 0
      %91 = vmatprep.subr.bf16.mxu0 0
      %92 = vmatpush1.bf16.msra.mxu0 0
      %93 = vmatprep.subr.bf16.mxu0 0
      %94 = vmatpush1.bf16.msra.mxu0 0
      %95 = vmatprep.subr.bf16.mxu0 0
      %96 = vmatpush1.bf16.msra.mxu0 0
      %97 = vmatprep.mubr.bf16.mxu0 0
      %98 = vmatmul.mubr.bf16.gmra.mrb[0].mxu0 %v63
      %v99 = vpop.f32.mrb[0].mxu0
      %v100 = vadd.f32 0.0, %v99
      %v101 = vpop.f32.mrb[0].mxu0
      %v102 = vpop.f32.mrb[0].mxu0
      %v103 = vpop.f32.mrb[0].mxu0
      %104 = vdwg.mxu0
      %v106 = vsel %vm61, %v54, 0
      %108 = vmatprep.subr.bf16.mxu0 0
      %109 = vmatpush1.bf16.msra.mxu0 %v36
      %110 = vmatprep.subr.bf16.mxu0 0
      %111 = vmatpush1.bf16.msra.mxu0 0
      %112 = vmatprep.subr.bf16.mxu0 0
      %113 = vmatpush1.bf16.msra.mxu0 0
      %114 = vmatprep.subr.bf16.mxu0 0
      %115 = vmatpush1.bf16.msra.mxu0 0
      %116 = vmatprep.subr.bf16.mxu0 0
      %117 = vmatpush1.bf16.msra.mxu0 0
      %118 = vmatprep.subr.bf16.mxu0 0
      %119 = vmatpush1.bf16.msra.mxu0 0
      %120 = vmatprep.subr.bf16.mxu0 0
      %121 = vmatpush1.bf16.msra.mxu0 0
      %122 = vmatprep.subr.bf16.mxu0 0
      %123 = vmatpush1.bf16.msra.mxu0 0
      %124 = vmatprep.subr.bf16.mxu0 0
      %125 = vmatpush1.bf16.msra.mxu0 0
      %126 = vmatprep.subr.bf16.mxu0 0
      %127 = vmatpush1.bf16.msra.mxu0 0
      %128 = vmatprep.subr.bf16.mxu0 0
      %129 = vmatpush1.bf16.msra.mxu0 0
      %130 = vmatprep.subr.bf16.mxu0 0
      %131 = vmatpush1.bf16.msra.mxu0 0
      %132 = vmatprep.subr.bf16.mxu0 0
      %133 = vmatpush1.bf16.msra.mxu0 0
      %134 = vmatprep.subr.bf16.mxu0 0
      %135 = vmatpush1.bf16.msra.mxu0 0
      %136 = vmatprep.subr.bf16.mxu0 0
      %137 = vmatpush1.bf16.msra.mxu0 0
      %138 = vmatprep.subr.bf16.mxu0 0
      %139 = vmatpush1.bf16.msra.mxu0 0
      %140 = vmatprep.mubr.bf16.mxu0 0
      %141 = vmatmul.mubr.bf16.gmra.mrb[0].mxu0 %v106
      %v142 = vpop.f32.mrb[0].mxu0
      %v143 = vadd.f32 %v100, %v142
      %v144 = vpop.f32.mrb[0].mxu0
      %v145 = vpop.f32.mrb[0].mxu0
      %v146 = vpop.f32.mrb[0].mxu0
      %147 = vdwg.mxu0
      %v149 = vsel %vm61, %v60, 0
      %151 = vmatprep.subr.bf16.mxu0 0
      %152 = vmatpush1.bf16.msra.mxu0 %v36
      %153 = vmatprep.subr.bf16.mxu0 0
      %154 = vmatpush1.bf16.msra.mxu0 0
      %155 = vmatprep.subr.bf16.mxu0 0
      %156 = vmatpush1.bf16.msra.mxu0 0
      %157 = vmatprep.subr.bf16.mxu0 0
      %158 = vmatpush1.bf16.msra.mxu0 0
      %159 = vmatprep.subr.bf16.mxu0 0
      %160 = vmatpush1.bf16.msra.mxu0 0
      %161 = vmatprep.subr.bf16.mxu0 0
      %162 = vmatpush1.bf16.msra.mxu0 0
      %163 = vmatprep.subr.bf16.mxu0 0
      %164 = vmatpush1.bf16.msra.mxu0 0
      %165 = vmatprep.subr.bf16.mxu0 0
      %166 = vmatpush1.bf16.msra.mxu0 0
      %167 = vmatprep.subr.bf16.mxu0 0
      %168 = vmatpush1.bf16.msra.mxu0 0
      %169 = vmatprep.subr.bf16.mxu0 0
      %170 = vmatpush1.bf16.msra.mxu0 0
      %171 = vmatprep.subr.bf16.mxu0 0
      %172 = vmatpush1.bf16.msra.mxu0 0
      %173 = vmatprep.subr.bf16.mxu0 0
      %174 = vmatpush1.bf16.msra.mxu0 0
      %175 = vmatprep.subr.bf16.mxu0 0
      %176 = vmatpush1.bf16.msra.mxu0 0
      %177 = vmatprep.subr.bf16.mxu0 0
      %178 = vmatpush1.bf16.msra.mxu0 0
      %179 = vmatprep.subr.bf16.mxu0 0
      %180 = vmatpush1.bf16.msra.mxu0 0
      %181 = vmatprep.subr.bf16.mxu0 0
      %182 = vmatpush1.bf16.msra.mxu0 0
      %183 = vmatprep.mubr.bf16.mxu0 0
      %184 = vmatmul.mubr.bf16.gmra.mrb[0].mxu0 %v149
      %v185 = vpop.f32.mrb[0].mxu0
      %v186 = vadd.f32 0.0, %v185
      %v187 = vpop.f32.mrb[0].mxu0
      %v188 = vpop.f32.mrb[0].mxu0
      %v189 = vpop.f32.mrb[0].mxu0
      %190 = vdwg.mxu0
      %v191 = vadd.f32 %v143, %v186
      %s192 = smul.u32 %s46, 32
      %s193 = scalar_lea.vmem [#allocation5], %s192
      %vm194 = vcmask 64512
      %195 = vst.msk [vmem:[%s193] sm:$0xff] %vm194, %v191
      %196 = vmatprep.subr.bf16.mxu0 0
      %197 = vmatpush1.bf16.msra.mxu0 %v44
      %198 = vmatprep.subr.bf16.mxu0 0
      %199 = vmatpush1.bf16.msra.mxu0 0
      %200 = vmatprep.subr.bf16.mxu0 0
      %201 = vmatpush1.bf16.msra.mxu0 0
      %202 = vmatprep.subr.bf16.mxu0 0
      %203 = vmatpush1.bf16.msra.mxu0 0
      %204 = vmatprep.subr.bf16.mxu0 0
      %205 = vmatpush1.bf16.msra.mxu0 0
      %206 = vmatprep.subr.bf16.mxu0 0
      %207 = vmatpush1.bf16.msra.mxu0 0
      %208 = vmatprep.subr.bf16.mxu0 0
      %209 = vmatpush1.bf16.msra.mxu0 0
      %210 = vmatprep.subr.bf16.mxu0 0
      %211 = vmatpush1.bf16.msra.mxu0 0
      %212 = vmatprep.subr.bf16.mxu0 0
      %213 = vmatpush1.bf16.msra.mxu0 0
      %214 = vmatprep.subr.bf16.mxu0 0
      %215 = vmatpush1.bf16.msra.mxu0 0
      %216 = vmatprep.subr.bf16.mxu0 0
      %217 = vmatpush1.bf16.msra.mxu0 0
      %218 = vmatprep.subr.bf16.mxu0 0
      %219 = vmatpush1.bf16.msra.mxu0 0
      %220 = vmatprep.subr.bf16.mxu0 0
      %221 = vmatpush1.bf16.msra.mxu0 0
      %222 = vmatprep.subr.bf16.mxu0 0
      %223 = vmatpush1.bf16.msra.mxu0 0
      %224 = vmatprep.subr.bf16.mxu0 0
      %225 = vmatpush1.bf16.msra.mxu0 0
      %226 = vmatprep.subr.bf16.mxu0 0
      %227 = vmatpush1.bf16.msra.mxu0 0
      %228 = vmatprep.mubr.bf16.mxu0 0
      %229 = vmatmul.mubr.bf16.gmra.mrb[0].mxu0 %v63
      %v230 = vpop.f32.mrb[0].mxu0
      %v231 = vadd.f32 0.0, %v230
      %v232 = vpop.f32.mrb[0].mxu0
      %v233 = vpop.f32.mrb[0].mxu0
      %v234 = vpop.f32.mrb[0].mxu0
      %235 = vdwg.mxu0
      %236 = vmatprep.subr.bf16.mxu0 0
      %237 = vmatpush1.bf16.msra.mxu0 %v44
      %238 = vmatprep.subr.bf16.mxu0 0
      %239 = vmatpush1.bf16.msra.mxu0 0
      %240 = vmatprep.subr.bf16.mxu0 0
      %241 = vmatpush1.bf16.msra.mxu0 0
      %242 = vmatprep.subr.bf16.mxu0 0
      %243 = vmatpush1.bf16.msra.mxu0 0
      %244 = vmatprep.subr.bf16.mxu0 0
      %245 = vmatpush1.bf16.msra.mxu0 0
      %246 = vmatprep.subr.bf16.mxu0 0
      %247 = vmatpush1.bf16.msra.mxu0 0
      %248 = vmatprep.subr.bf16.mxu0 0
      %249 = vmatpush1.bf16.msra.mxu0 0
      %250 = vmatprep.subr.bf16.mxu0 0
      %251 = vmatpush1.bf16.msra.mxu0 0
      %252 = vmatprep.subr.bf16.mxu0 0
      %253 = vmatpush1.bf16.msra.mxu0 0
      %254 = vmatprep.subr.bf16.mxu0 0
      %255 = vmatpush1.bf16.msra.mxu0 0
      %256 = vmatprep.subr.bf16.mxu0 0
      %257 = vmatpush1.bf16.msra.mxu0 0
      %258 = vmatprep.subr.bf16.mxu0 0
      %259 = vmatpush1.bf16.msra.mxu0 0
      %260 = vmatprep.subr.bf16.mxu0 0
      %261 = vmatpush1.bf16.msra.mxu0 0
      %262 = vmatprep.subr.bf16.mxu0 0
      %263 = vmatpush1.bf16.msra.mxu0 0
      %264 = vmatprep.subr.bf16.mxu0 0
      %265 = vmatpush1.bf16.msra.mxu0 0
      %266 = vmatprep.subr.bf16.mxu0 0
      %267 = vmatpush1.bf16.msra.mxu0 0
      %268 = vmatprep.mubr.bf16.mxu0 0
      %269 = vmatmul.mubr.bf16.gmra.mrb[0].mxu0 %v106
      %v270 = vpop.f32.mrb[0].mxu0
      %v271 = vadd.f32 %v231, %v270
      %v272 = vpop.f32.mrb[0].mxu0
      %v273 = vpop.f32.mrb[0].mxu0
      %v274 = vpop.f32.mrb[0].mxu0
      %275 = vdwg.mxu0
      %276 = vmatprep.subr.bf16.mxu0 0
      %277 = vmatpush1.bf16.msra.mxu0 %v44
      %278 = vmatprep.subr.bf16.mxu0 0
      %279 = vmatpush1.bf16.msra.mxu0 0
      %280 = vmatprep.subr.bf16.mxu0 0
      %281 = vmatpush1.bf16.msra.mxu0 0
      %282 = vmatprep.subr.bf16.mxu0 0
      %283 = vmatpush1.bf16.msra.mxu0 0
      %284 = vmatprep.subr.bf16.mxu0 0
      %285 = vmatpush1.bf16.msra.mxu0 0
      %286 = vmatprep.subr.bf16.mxu0 0
      %287 = vmatpush1.bf16.msra.mxu0 0
      %288 = vmatprep.subr.bf16.mxu0 0
      %289 = vmatpush1.bf16.msra.mxu0 0
      %290 = vmatprep.subr.bf16.mxu0 0
      %291 = vmatpush1.bf16.msra.mxu0 0
      %292 = vmatprep.subr.bf16.mxu0 0
      %293 = vmatpush1.bf16.msra.mxu0 0
      %294 = vmatprep.subr.bf16.mxu0 0
      %295 = vmatpush1.bf16.msra.mxu0 0
      %296 = vmatprep.subr.bf16.mxu0 0
      %297 = vmatpush1.bf16.msra.mxu0 0
      %298 = vmatprep.subr.bf16.mxu0 0
      %299 = vmatpush1.bf16.msra.mxu0 0
      %300 = vmatprep.subr.bf16.mxu0 0
      %301 = vmatpush1.bf16.msra.mxu0 0
      %302 = vmatprep.subr.bf16.mxu0 0
      %303 = vmatpush1.bf16.msra.mxu0 0
      %304 = vmatprep.subr.bf16.mxu0 0
      %305 = vmatpush1.bf16.msra.mxu0 0
      %306 = vmatprep.subr.bf16.mxu0 0
      %307 = vmatpush1.bf16.msra.mxu0 0
      %308 = vmatprep.mubr.bf16.mxu0 0
      %309 = vmatmul.mubr.bf16.gmra.mrb[0].mxu0 %v149
      %v310 = vpop.f32.mrb[0].mxu0
      %v311 = vadd.f32 0.0, %v310
      %v312 = vpop.f32.mrb[0].mxu0
      %v313 = vpop.f32.mrb[0].mxu0
      %v314 = vpop.f32.mrb[0].mxu0
      %315 = vdwg.mxu0
      %v316 = vadd.f32 %v271, %v311
      %s317 = sadd.s32 8, %s192
      %s318 = scalar_lea.vmem [#allocation5], %s317
      %319 = vst.msk [vmem:[%s318] sm:$0xff] %vm194, %v316
      %v320 = vld [vmem:[%s52] sm:$0xff]
      %v321 = vpack.c.bf16 %v320, %v320
      %v322 = vunpack.c.l.bf16 %v321
      %v323 = vsub.f32 %v320, %v322
      %v324 = vpack.c.bf16 %v323, %v323
      %v325 = vunpack.c.l.bf16 %v324
      %v326 = vsub.f32 %v323, %v325
      %v327 = vpack.c.bf16 %v326, %v326
      %329 = vrot.lane.b32.xlu0 %v324, 112
      %v330 = vpop.permute.xlu0 %329
      %v332 = vsel %vm61, %v330, 0
      %334 = vmatprep.subr.bf16.mxu0 0
      %335 = vmatpush1.bf16.msra.mxu0 %v36
      %336 = vmatprep.subr.bf16.mxu0 0
      %337 = vmatpush1.bf16.msra.mxu0 0
      %338 = vmatprep.subr.bf16.mxu0 0
      %339 = vmatpush1.bf16.msra.mxu0 0
      %340 = vmatprep.subr.bf16.mxu0 0
      %341 = vmatpush1.bf16.msra.mxu0 0
      %342 = vmatprep.subr.bf16.mxu0 0
      %343 = vmatpush1.bf16.msra.mxu0 0
      %344 = vmatprep.subr.bf16.mxu0 0
      %345 = vmatpush1.bf16.msra.mxu0 0
      %346 = vmatprep.subr.bf16.mxu0 0
      %347 = vmatpush1.bf16.msra.mxu0 0
      %348 = vmatprep.subr.bf16.mxu0 0
      %349 = vmatpush1.bf16.msra.mxu0 0
      %350 = vmatprep.subr.bf16.mxu0 0
      %351 = vmatpush1.bf16.msra.mxu0 0
      %352 = vmatprep.subr.bf16.mxu0 0
      %353 = vmatpush1.bf16.msra.mxu0 0
      %354 = vmatprep.subr.bf16.mxu0 0
      %355 = vmatpush1.bf16.msra.mxu0 0
      %356 = vmatprep.subr.bf16.mxu0 0
      %357 = vmatpush1.bf16.msra.mxu0 0
      %358 = vmatprep.subr.bf16.mxu0 0
      %359 = vmatpush1.bf16.msra.mxu0 0
      %360 = vmatprep.subr.bf16.mxu0 0
      %361 = vmatpush1.bf16.msra.mxu0 0
      %362 = vmatprep.subr.bf16.mxu0 0
      %363 = vmatpush1.bf16.msra.mxu0 0
      %364 = vmatprep.subr.bf16.mxu0 0
      %365 = vmatpush1.bf16.msra.mxu0 0
      %366 = vmatprep.mubr.bf16.mxu0 0
      %367 = vmatmul.mubr.bf16.gmra.mrb[0].mxu0 %v332
      %v368 = vpop.f32.mrb[0].mxu0
      %v369 = vadd.f32 0.0, %v368
      %v370 = vpop.f32.mrb[0].mxu0
      %v371 = vpop.f32.mrb[0].mxu0
      %v372 = vpop.f32.mrb[0].mxu0
      %373 = vdwg.mxu0
      %375 = vrot.lane.b32.xlu0 %v321, 112
      %v376 = vpop.permute.xlu0 %375
      %v378 = vsel %vm61, %v376, 0
      %380 = vmatprep.subr.bf16.mxu0 0
      %381 = vmatpush1.bf16.msra.mxu0 %v36
      %382 = vmatprep.subr.bf16.mxu0 0
      %383 = vmatpush1.bf16.msra.mxu0 0
      %384 = vmatprep.subr.bf16.mxu0 0
      %385 = vmatpush1.bf16.msra.mxu0 0
      %386 = vmatprep.subr.bf16.mxu0 0
      %387 = vmatpush1.bf16.msra.mxu0 0
      %388 = vmatprep.subr.bf16.mxu0 0
      %389 = vmatpush1.bf16.msra.mxu0 0
      %390 = vmatprep.subr.bf16.mxu0 0
      %391 = vmatpush1.bf16.msra.mxu0 0
      %392 = vmatprep.subr.bf16.mxu0 0
      %393 = vmatpush1.bf16.msra.mxu0 0
      %394 = vmatprep.subr.bf16.mxu0 0
      %395 = vmatpush1.bf16.msra.mxu0 0
      %396 = vmatprep.subr.bf16.mxu0 0
      %397 = vmatpush1.bf16.msra.mxu0 0
      %398 = vmatprep.subr.bf16.mxu0 0
      %399 = vmatpush1.bf16.msra.mxu0 0
      %400 = vmatprep.subr.bf16.mxu0 0
      %401 = vmatpush1.bf16.msra.mxu0 0
      %402 = vmatprep.subr.bf16.mxu0 0
      %403 = vmatpush1.bf16.msra.mxu0 0
      %404 = vmatprep.subr.bf16.mxu0 0
      %405 = vmatpush1.bf16.msra.mxu0 0
      %406 = vmatprep.subr.bf16.mxu0 0
      %407 = vmatpush1.bf16.msra.mxu0 0
      %408 = vmatprep.subr.bf16.mxu0 0
      %409 = vmatpush1.bf16.msra.mxu0 0
      %410 = vmatprep.subr.bf16.mxu0 0
      %411 = vmatpush1.bf16.msra.mxu0 0
      %412 = vmatprep.mubr.bf16.mxu0 0
      %413 = vmatmul.mubr.bf16.gmra.mrb[0].mxu0 %v378
      %v414 = vpop.f32.mrb[0].mxu0
      %v415 = vadd.f32 %v369, %v414
      %v416 = vpop.f32.mrb[0].mxu0
      %v417 = vpop.f32.mrb[0].mxu0
      %v418 = vpop.f32.mrb[0].mxu0
      %419 = vdwg.mxu0
      %421 = vrot.lane.b32.xlu0 %v327, 112
      %v422 = vpop.permute.xlu0 %421
      %v424 = vsel %vm61, %v422, 0
      %426 = vmatprep.subr.bf16.mxu0 0
      %427 = vmatpush1.bf16.msra.mxu0 %v36
      %428 = vmatprep.subr.bf16.mxu0 0
      %429 = vmatpush1.bf16.msra.mxu0 0
      %430 = vmatprep.subr.bf16.mxu0 0
      %431 = vmatpush1.bf16.msra.mxu0 0
      %432 = vmatprep.subr.bf16.mxu0 0
      %433 = vmatpush1.bf16.msra.mxu0 0
      %434 = vmatprep.subr.bf16.mxu0 0
      %435 = vmatpush1.bf16.msra.mxu0 0
      %436 = vmatprep.subr.bf16.mxu0 0
      %437 = vmatpush1.bf16.msra.mxu0 0
      %438 = vmatprep.subr.bf16.mxu0 0
      %439 = vmatpush1.bf16.msra.mxu0 0
      %440 = vmatprep.subr.bf16.mxu0 0
      %441 = vmatpush1.bf16.msra.mxu0 0
      %442 = vmatprep.subr.bf16.mxu0 0
      %443 = vmatpush1.bf16.msra.mxu0 0
      %444 = vmatprep.subr.bf16.mxu0 0
      %445 = vmatpush1.bf16.msra.mxu0 0
      %446 = vmatprep.subr.bf16.mxu0 0
      %447 = vmatpush1.bf16.msra.mxu0 0
      %448 = vmatprep.subr.bf16.mxu0 0
      %449 = vmatpush1.bf16.msra.mxu0 0
      %450 = vmatprep.subr.bf16.mxu0 0
      %451 = vmatpush1.bf16.msra.mxu0 0
      %452 = vmatprep.subr.bf16.mxu0 0
      %453 = vmatpush1.bf16.msra.mxu0 0
      %454 = vmatprep.subr.bf16.mxu0 0
      %455 = vmatpush1.bf16.msra.mxu0 0
      %456 = vmatprep.subr.bf16.mxu0 0
      %457 = vmatpush1.bf16.msra.mxu0 0
      %458 = vmatprep.mubr.bf16.mxu0 0
      %459 = vmatmul.mubr.bf16.gmra.mrb[0].mxu0 %v424
      %v460 = vpop.f32.mrb[0].mxu0
      %v461 = vadd.f32 0.0, %v460
      %v462 = vpop.f32.mrb[0].mxu0
      %v463 = vpop.f32.mrb[0].mxu0
      %v464 = vpop.f32.mrb[0].mxu0
      %465 = vdwg.mxu0
      %v466 = vadd.f32 %v415, %v461
      %s467 = sadd.s32 16, %s192
      %s468 = scalar_lea.vmem [#allocation5], %s467
      %469 = vst.msk [vmem:[%s468] sm:$0xff] %vm194, %v466
      %470 = vmatprep.subr.bf16.mxu0 0
      %471 = vmatpush1.bf16.msra.mxu0 %v44
      %472 = vmatprep.subr.bf16.mxu0 0
      %473 = vmatpush1.bf16.msra.mxu0 0
      %474 = vmatprep.subr.bf16.mxu0 0
      %475 = vmatpush1.bf16.msra.mxu0 0
      %476 = vmatprep.subr.bf16.mxu0 0
      %477 = vmatpush1.bf16.msra.mxu0 0
      %478 = vmatprep.subr.bf16.mxu0 0
      %479 = vmatpush1.bf16.msra.mxu0 0
      %480 = vmatprep.subr.bf16.mxu0 0
      %481 = vmatpush1.bf16.msra.mxu0 0
      %482 = vmatprep.subr.bf16.mxu0 0
      %483 = vmatpush1.bf16.msra.mxu0 0
      %484 = vmatprep.subr.bf16.mxu0 0
      %485 = vmatpush1.bf16.msra.mxu0 0
      %486 = vmatprep.subr.bf16.mxu0 0
      %487 = vmatpush1.bf16.msra.mxu0 0
      %488 = vmatprep.subr.bf16.mxu0 0
      %489 = vmatpush1.bf16.msra.mxu0 0
      %490 = vmatprep.subr.bf16.mxu0 0
      %491 = vmatpush1.bf16.msra.mxu0 0
      %492 = vmatprep.subr.bf16.mxu0 0
      %493 = vmatpush1.bf16.msra.mxu0 0
      %494 = vmatprep.subr.bf16.mxu0 0
      %495 = vmatpush1.bf16.msra.mxu0 0
      %496 = vmatprep.subr.bf16.mxu0 0
      %497 = vmatpush1.bf16.msra.mxu0 0
      %498 = vmatprep.subr.bf16.mxu0 0
      %499 = vmatpush1.bf16.msra.mxu0 0
      %500 = vmatprep.subr.bf16.mxu0 0
      %501 = vmatpush1.bf16.msra.mxu0 0
      %502 = vmatprep.mubr.bf16.mxu0 0
      %503 = vmatmul.mubr.bf16.gmra.mrb[0].mxu0 %v332
      %v504 = vpop.f32.mrb[0].mxu0
      %v505 = vadd.f32 0.0, %v504
      %v506 = vpop.f32.mrb[0].mxu0
      %v507 = vpop.f32.mrb[0].mxu0
      %v508 = vpop.f32.mrb[0].mxu0
      %509 = vdwg.mxu0
      %510 = vmatprep.subr.bf16.mxu0 0
      %511 = vmatpush1.bf16.msra.mxu0 %v44
      %512 = vmatprep.subr.bf16.mxu0 0
      %513 = vmatpush1.bf16.msra.mxu0 0
      %514 = vmatprep.subr.bf16.mxu0 0
      %515 = vmatpush1.bf16.msra.mxu0 0
      %516 = vmatprep.subr.bf16.mxu0 0
      %517 = vmatpush1.bf16.msra.mxu0 0
      %518 = vmatprep.subr.bf16.mxu0 0
      %519 = vmatpush1.bf16.msra.mxu0 0
      %520 = vmatprep.subr.bf16.mxu0 0
      %521 = vmatpush1.bf16.msra.mxu0 0
      %522 = vmatprep.subr.bf16.mxu0 0
      %523 = vmatpush1.bf16.msra.mxu0 0
      %524 = vmatprep.subr.bf16.mxu0 0
      %525 = vmatpush1.bf16.msra.mxu0 0
      %526 = vmatprep.subr.bf16.mxu0 0
      %527 = vmatpush1.bf16.msra.mxu0 0
      %528 = vmatprep.subr.bf16.mxu0 0
      %529 = vmatpush1.bf16.msra.mxu0 0
      %530 = vmatprep.subr.bf16.mxu0 0
      %531 = vmatpush1.bf16.msra.mxu0 0
      %532 = vmatprep.subr.bf16.mxu0 0
      %533 = vmatpush1.bf16.msra.mxu0 0
      %534 = vmatprep.subr.bf16.mxu0 0
      %535 = vmatpush1.bf16.msra.mxu0 0
      %536 = vmatprep.subr.bf16.mxu0 0
      %537 = vmatpush1.bf16.msra.mxu0 0
      %538 = vmatprep.subr.bf16.mxu0 0
      %539 = vmatpush1.bf16.msra.mxu0 0
      %540 = vmatprep.subr.bf16.mxu0 0
      %541 = vmatpush1.bf16.msra.mxu0 0
      %542 = vmatprep.mubr.bf16.mxu0 0
      %543 = vmatmul.mubr.bf16.gmra.mrb[0].mxu0 %v378
      %v544 = vpop.f32.mrb[0].mxu0
      %v545 = vadd.f32 %v505, %v544
      %v546 = vpop.f32.mrb[0].mxu0
      %v547 = vpop.f32.mrb[0].mxu0
      %v548 = vpop.f32.mrb[0].mxu0
      %549 = vdwg.mxu0
      %550 = vmatprep.subr.bf16.mxu0 0
      %551 = vmatpush1.bf16.msra.mxu0 %v44
      %552 = vmatprep.subr.bf16.mxu0 0
      %553 = vmatpush1.bf16.msra.mxu0 0
      %554 = vmatprep.subr.bf16.mxu0 0
      %555 = vmatpush1.bf16.msra.mxu0 0
      %556 = vmatprep.subr.bf16.mxu0 0
      %557 = vmatpush1.bf16.msra.mxu0 0
      %558 = vmatprep.subr.bf16.mxu0 0
      %559 = vmatpush1.bf16.msra.mxu0 0
      %560 = vmatprep.subr.bf16.mxu0 0
      %561 = vmatpush1.bf16.msra.mxu0 0
      %562 = vmatprep.subr.bf16.mxu0 0
      %563 = vmatpush1.bf16.msra.mxu0 0
      %564 = vmatprep.subr.bf16.mxu0 0
      %565 = vmatpush1.bf16.msra.mxu0 0
      %566 = vmatprep.subr.bf16.mxu0 0
      %567 = vmatpush1.bf16.msra.mxu0 0
      %568 = vmatprep.subr.bf16.mxu0 0
      %569 = vmatpush1.bf16.msra.mxu0 0
      %570 = vmatprep.subr.bf16.mxu0 0
      %571 = vmatpush1.bf16.msra.mxu0 0
      %572 = vmatprep.subr.bf16.mxu0 0
      %573 = vmatpush1.bf16.msra.mxu0 0
      %574 = vmatprep.subr.bf16.mxu0 0
      %575 = vmatpush1.bf16.msra.mxu0 0
      %576 = vmatprep.subr.bf16.mxu0 0
      %577 = vmatpush1.bf16.msra.mxu0 0
      %578 = vmatprep.subr.bf16.mxu0 0
      %579 = vmatpush1.bf16.msra.mxu0 0
      %580 = vmatprep.subr.bf16.mxu0 0
      %581 = vmatpush1.bf16.msra.mxu0 0
      %582 = vmatprep.mubr.bf16.mxu0 0
      %583 = vmatmul.mubr.bf16.gmra.mrb[0].mxu0 %v424
      %v584 = vpop.f32.mrb[0].mxu0
      %v585 = vadd.f32 0.0, %v584
      %v586 = vpop.f32.mrb[0].mxu0
      %v587 = vpop.f32.mrb[0].mxu0
      %v588 = vpop.f32.mrb[0].mxu0
      %589 = vdwg.mxu0
      %v590 = vadd.f32 %v545, %v585
      %s591 = sadd.s32 24, %s192
      %s592 = scalar_lea.vmem [#allocation5], %s591
      %593 = vst.msk [vmem:[%s592] sm:$0xff] %vm194, %v590
    $region14: #{tpu_custom_call.1} parent=1 // loop_footer
      %s50 = sadd.s32 1, %s46
    $region15: #{tpu_custom_call.1} parent=1 // loop_footer_branch
      %45 = sbr.rel target = $region11
    $region16: #{tpu_custom_call.1} parent=1 // loop_exit
      _
    // Predicated region
    $region17: #{tpu_custom_call.1} parent=1 // pred_check
      _
    $region18: #{tpu_custom_call.1} parent=1 // pred_check_branch
      %595 = sbr.rel (0) target = $region20
    $region19: #{tpu_custom_call.1} parent=1 // pred_region
      %s597 = ssub.s32 4096, 4096
      %598 = vsyncadd [#allocation4], %s597
      %s599 = sshll.u32 [#allocation5], 4
      %s600 = int_to_ptr.vmem [resolvable:$true] %s599
      %605 = dma.vmem_to_hbm [thread:$0]  %s600, 4096, %s1, [#allocation4], 128, 128, 8
    $region20: #{tpu_custom_call.1} parent=1 // pred_fallthru
      _
    // Predicated region
    $region21: #{tpu_custom_call.1} parent=1 // pred_check
      _
    $region22: #{tpu_custom_call.1} parent=1 // pred_check_branch
      %607 = sbr.rel (0) target = $region24
    $region23: #{tpu_custom_call.1} parent=1 // pred_region
      %608 = dma.done [#allocation4], 4096
    $region24: #{tpu_custom_call.1} parent=1 // pred_fallthru
      _
    %609 = vsyncpa [#allocation3], 1
    %610 = vsyncpa [#allocation4], 1

</llo_original>
